<compile_context>
chip_gen: v5e
topology: v5e:2x2
jax: 0.10.0
libtpu: 0.0.40
codegen_flags: <defaults>
</compile_context>

<pallas_src>
import functools
import math

import jax
import jax.numpy as jnp
from jax.experimental import pallas as pl
from jax.experimental.pallas import tpu as pltpu


def _norm_loss_kernel(x_ref, out_ref, *, rows_per_block, pack, d, n_valid_rows):
    i = pl.program_id(0)

    x = x_ref[...].astype(jnp.float32)                 # (TR, pack*D), f32 compute
    xx = x * x

    # Mask slab rows past the true row count (ragged last tile -> contribute 0).
    row_ids = jax.lax.broadcasted_iota(jnp.int32, (rows_per_block, 1), 0)
    valid = (i * rows_per_block + row_ids) < n_valid_rows      # (TR, 1)

    # Segmented per-row reduction: each slab row holds `pack` original rows of
    # width D packed along lanes (lane-dense layout for small D).  Static lane
    # slices + lane reductions only (no 3-D reshapes inside the kernel).
    nrm_sum = jnp.zeros((rows_per_block, 1), jnp.float32)
    for j in range(pack):
        sq = jnp.sum(xx[:, j * d:(j + 1) * d], axis=-1, keepdims=True)  # (TR, 1)
        nrm_sum = nrm_sum + jnp.sqrt(jnp.where(valid, sq, 0.0))

    partial = jnp.sum(nrm_sum)                         # one scalar per (large) tile

    # Write the per-tile partial into a lane-dense (8,128) block: [0,0] = partial,
    # exact zeros elsewhere (unmasked full-width store).
    r = jax.lax.broadcasted_iota(jnp.int32, (8, 128), 0)
    c = jax.lax.broadcasted_iota(jnp.int32, (8, 128), 1)
    out_ref[...] = jnp.where((r == 0) & (c == 0), partial, 0.0)


def norm_loss(x, lam_norm=1.0, return_terms=False,
              target_block_bytes=2 * 1024 * 1024):
    """Pallas TPU implementation of NormLoss.forward."""
    D = int(x.shape[-1])
    R = 1
    for s in x.shape[:-1]:
        R *= int(s)

    # Lane-densify narrow rows: fuse `pack` consecutive rows per slab row so the
    # slab width is a multiple of 128 lanes (metadata-only reshape).
    pack = 1
    if D < 128:
        p = 128 // math.gcd(D, 128)
        if 1 < p <= 64 and R % p == 0:
            pack = p
    W = pack * D
    n_rows = R // pack
    x2 = x.reshape(n_rows, W)

    # Row-tile size: ~target_block_bytes of input per block, rounded to the
    # sublane packing granularity for this dtype, never larger than needed.
    itemsize = jnp.dtype(x.dtype).itemsize
    sub = max(8, 32 // itemsize)                 # 8 (f32) / 16 (bf16) / 32 (int8)
    tr = max(1, target_block_bytes // max(1, W * itemsize))
    tr = max(sub, (tr // sub) * sub)
    if n_rows >= sub:
        tr = min(tr, (n_rows // sub) * sub)
    tr = int(tr)
    nt = -(-n_rows // tr)                        # ceil-div, Python int

    kernel = functools.partial(
        _norm_loss_kernel,
        rows_per_block=tr, pack=int(pack), d=D, n_valid_rows=int(n_rows))

    out = pl.pallas_call(
        kernel,
        out_shape=jax.ShapeDtypeStruct((nt * 8, 128), jnp.float32),
        grid_spec=pltpu.PrefetchScalarGridSpec(
            num_scalar_prefetch=0,
            grid=(nt,),
            in_specs=[pl.BlockSpec((tr, W), lambda i: (i, 0))],
            out_specs=pl.BlockSpec((8, 128), lambda i: (i, 0)),
        ),
        compiler_params=pltpu.CompilerParams(
            dimension_semantics=("parallel",),
            vmem_limit_bytes=32 * 1024 * 1024,
        ),
        cost_estimate=pl.CostEstimate(
            flops=2 * R * D,
            transcendentals=R,
            bytes_accessed=int(R * D * itemsize + nt * 8 * 128 * 4),
        ),
    )(x2)

    # Tiny finisher in plain JAX: per-tile partial sums -> mean -> weight.
    partials = out.reshape(nt, 8, 128)[:, 0, 0]
    norm_val = jnp.sum(partials) * (1.0 / float(R))
    loss = jnp.float32(lam_norm) * norm_val
    if return_terms:
        return loss, {"norm_loss": norm_val}
    return loss


def get_zero_loss_terms():
    return {"norm_loss": jnp.float32(0.0)}


if __name__ == "__main__":
    key = jax.random.PRNGKey(0)
    k1, k2, k3 = jax.random.split(key, 3)
    lam_norm = 1.0

    # Case 1: NCHW-like input, narrow last dim (D=16 -> lane-packed path).
    x1 = jax.random.normal(k1, (2, 4, 16, 16), dtype=jnp.float32)
    loss1, terms1 = norm_loss(x1, lam_norm=lam_norm, return_terms=True)
    loss1 = jax.block_until_ready(loss1)
    ref_norm1 = jnp.mean(jnp.linalg.norm(x1, axis=-1))
    assert jnp.allclose(terms1["norm_loss"], ref_norm1, rtol=1e-5, atol=1e-5), \
        (terms1["norm_loss"], ref_norm1)
    assert jnp.allclose(loss1, lam_norm * ref_norm1, rtol=1e-5, atol=1e-5)

    # Case 2: wide last dim (D=256 -> direct path), exact tiling.
    x2 = jax.random.normal(k2, (2, 8, 256), dtype=jnp.float32)
    loss2 = jax.block_until_ready(norm_loss(x2, lam_norm=0.5))
    ref2 = 0.5 * jnp.mean(jnp.linalg.norm(x2, axis=-1))
    assert jnp.allclose(loss2, ref2, rtol=1e-5, atol=1e-5), (loss2, ref2)

    # Case 3: bf16 input with a ragged row count (exercises in-kernel masking,
    # no jnp.pad, bf16 kept in HBM and upcast per-tile in the kernel).
    x3 = jax.random.normal(k3, (4, 5, 256), dtype=jnp.float32).astype(jnp.bfloat16)
    loss3 = jax.block_until_ready(norm_loss(x3, lam_norm=lam_norm))
    ref3 = lam_norm * jnp.mean(jnp.linalg.norm(x3.astype(jnp.float32), axis=-1))
    assert jnp.allclose(loss3, ref3, rtol=1e-4, atol=1e-4), (loss3, ref3)

    print("KERNEL_OK")
</pallas_src>

<mosaic_0001>
module attributes {stable_mosaic.version = 11 : i64} {
  func.func @_norm_loss_kernel(%arg0: i32, %arg1: memref<16x128xf32, #tpu.memory_space<vmem>>, %arg2: memref<8x128xf32, #tpu.memory_space<vmem>>) attributes {dimension_semantics = [#tpu.dimension_semantics<parallel>], iteration_bounds = array<i64: 1>, scalar_prefetch = 0 : i64, scratch_operands = 0 : i64, tpu.core_type = #tpu.core_type<tc>, window_params = [{transform_indices = @transform_0, window_bounds = array<i64: 16, 128>}, {transform_indices = @transform_1, window_bounds = array<i64: 8, 128>}]} {
    %c0 = arith.constant 0 : index
    %c0_0 = arith.constant 0 : index
    %0 = vector.load %arg1[%c0, %c0_0] : memref<16x128xf32, #tpu.memory_space<vmem>>, vector<16x128xf32>
    %1 = arith.mulf %0, %0 : vector<16x128xf32>
    %2 = tpu.iota {dimensions = array<i32: 0>} : vector<16x1xi32>
    %c16_i32 = arith.constant 16 : i32
    %3 = arith.muli %arg0, %c16_i32 : i32
    %4 = vector.broadcast %3 : i32 to vector<16x1xi32>
    %5 = arith.addi %4, %2 : vector<16x1xi32>
    %c16_i32_1 = arith.constant 16 : i32
    %6 = vector.broadcast %c16_i32_1 : i32 to vector<16x1xi32>
    %7 = arith.cmpi slt, %5, %6 : vector<16x1xi32>
    %cst = arith.constant 0.000000e+00 : f32
    %8 = vector.broadcast %cst : f32 to vector<16x1xf32>
    %9 = vector.extract_strided_slice %1 {offsets = [0, 0], sizes = [16, 16], strides = [1, 1]} : vector<16x128xf32> to vector<16x16xf32>
    %cst_2 = arith.constant dense<0.000000e+00> : vector<16xf32>
    %10 = vector.multi_reduction <add>, %9, %cst_2 [1] : vector<16x16xf32> to vector<16xf32>
    %11 = vector.shape_cast %10 : vector<16xf32> to vector<16x1xf32>
    %cst_3 = arith.constant 0.000000e+00 : f32
    %12 = vector.broadcast %cst_3 : f32 to vector<16x1xf32>
    %13 = arith.select %7, %11, %12 : vector<16x1xi1>, vector<16x1xf32>
    %14 = math.sqrt %13 : vector<16x1xf32>
    %15 = arith.addf %8, %14 : vector<16x1xf32>
    %16 = vector.extract_strided_slice %1 {offsets = [0, 16], sizes = [16, 16], strides = [1, 1]} : vector<16x128xf32> to vector<16x16xf32>
    %cst_4 = arith.constant dense<0.000000e+00> : vector<16xf32>
    %17 = vector.multi_reduction <add>, %16, %cst_4 [1] : vector<16x16xf32> to vector<16xf32>
    %18 = vector.shape_cast %17 : vector<16xf32> to vector<16x1xf32>
    %cst_5 = arith.constant 0.000000e+00 : f32
    %19 = vector.broadcast %cst_5 : f32 to vector<16x1xf32>
    %20 = arith.select %7, %18, %19 : vector<16x1xi1>, vector<16x1xf32>
    %21 = math.sqrt %20 : vector<16x1xf32>
    %22 = arith.addf %15, %21 : vector<16x1xf32>
    %23 = vector.extract_strided_slice %1 {offsets = [0, 32], sizes = [16, 16], strides = [1, 1]} : vector<16x128xf32> to vector<16x16xf32>
    %cst_6 = arith.constant dense<0.000000e+00> : vector<16xf32>
    %24 = vector.multi_reduction <add>, %23, %cst_6 [1] : vector<16x16xf32> to vector<16xf32>
    %25 = vector.shape_cast %24 : vector<16xf32> to vector<16x1xf32>
    %cst_7 = arith.constant 0.000000e+00 : f32
    %26 = vector.broadcast %cst_7 : f32 to vector<16x1xf32>
    %27 = arith.select %7, %25, %26 : vector<16x1xi1>, vector<16x1xf32>
    %28 = math.sqrt %27 : vector<16x1xf32>
    %29 = arith.addf %22, %28 : vector<16x1xf32>
    %30 = vector.extract_strided_slice %1 {offsets = [0, 48], sizes = [16, 16], strides = [1, 1]} : vector<16x128xf32> to vector<16x16xf32>
    %cst_8 = arith.constant dense<0.000000e+00> : vector<16xf32>
    %31 = vector.multi_reduction <add>, %30, %cst_8 [1] : vector<16x16xf32> to vector<16xf32>
    %32 = vector.shape_cast %31 : vector<16xf32> to vector<16x1xf32>
    %cst_9 = arith.constant 0.000000e+00 : f32
    %33 = vector.broadcast %cst_9 : f32 to vector<16x1xf32>
    %34 = arith.select %7, %32, %33 : vector<16x1xi1>, vector<16x1xf32>
    %35 = math.sqrt %34 : vector<16x1xf32>
    %36 = arith.addf %29, %35 : vector<16x1xf32>
    %37 = vector.extract_strided_slice %1 {offsets = [0, 64], sizes = [16, 16], strides = [1, 1]} : vector<16x128xf32> to vector<16x16xf32>
    %cst_10 = arith.constant dense<0.000000e+00> : vector<16xf32>
    %38 = vector.multi_reduction <add>, %37, %cst_10 [1] : vector<16x16xf32> to vector<16xf32>
    %39 = vector.shape_cast %38 : vector<16xf32> to vector<16x1xf32>
    %cst_11 = arith.constant 0.000000e+00 : f32
    %40 = vector.broadcast %cst_11 : f32 to vector<16x1xf32>
    %41 = arith.select %7, %39, %40 : vector<16x1xi1>, vector<16x1xf32>
    %42 = math.sqrt %41 : vector<16x1xf32>
    %43 = arith.addf %36, %42 : vector<16x1xf32>
    %44 = vector.extract_strided_slice %1 {offsets = [0, 80], sizes = [16, 16], strides = [1, 1]} : vector<16x128xf32> to vector<16x16xf32>
    %cst_12 = arith.constant dense<0.000000e+00> : vector<16xf32>
    %45 = vector.multi_reduction <add>, %44, %cst_12 [1] : vector<16x16xf32> to vector<16xf32>
    %46 = vector.shape_cast %45 : vector<16xf32> to vector<16x1xf32>
    %cst_13 = arith.constant 0.000000e+00 : f32
    %47 = vector.broadcast %cst_13 : f32 to vector<16x1xf32>
    %48 = arith.select %7, %46, %47 : vector<16x1xi1>, vector<16x1xf32>
    %49 = math.sqrt %48 : vector<16x1xf32>
    %50 = arith.addf %43, %49 : vector<16x1xf32>
    %51 = vector.extract_strided_slice %1 {offsets = [0, 96], sizes = [16, 16], strides = [1, 1]} : vector<16x128xf32> to vector<16x16xf32>
    %cst_14 = arith.constant dense<0.000000e+00> : vector<16xf32>
    %52 = vector.multi_reduction <add>, %51, %cst_14 [1] : vector<16x16xf32> to vector<16xf32>
    %53 = vector.shape_cast %52 : vector<16xf32> to vector<16x1xf32>
    %cst_15 = arith.constant 0.000000e+00 : f32
    %54 = vector.broadcast %cst_15 : f32 to vector<16x1xf32>
    %55 = arith.select %7, %53, %54 : vector<16x1xi1>, vector<16x1xf32>
    %56 = math.sqrt %55 : vector<16x1xf32>
    %57 = arith.addf %50, %56 : vector<16x1xf32>
    %58 = vector.extract_strided_slice %1 {offsets = [0, 112], sizes = [16, 16], strides = [1, 1]} : vector<16x128xf32> to vector<16x16xf32>
    %cst_16 = arith.constant dense<0.000000e+00> : vector<16xf32>
    %59 = vector.multi_reduction <add>, %58, %cst_16 [1] : vector<16x16xf32> to vector<16xf32>
    %60 = vector.shape_cast %59 : vector<16xf32> to vector<16x1xf32>
    %cst_17 = arith.constant 0.000000e+00 : f32
    %61 = vector.broadcast %cst_17 : f32 to vector<16x1xf32>
    %62 = arith.select %7, %60, %61 : vector<16x1xi1>, vector<16x1xf32>
    %63 = math.sqrt %62 : vector<16x1xf32>
    %64 = arith.addf %57, %63 : vector<16x1xf32>
    %65 = vector.shape_cast %64 : vector<16x1xf32> to vector<1x16x1xf32>
    %cst_18 = arith.constant dense<0.000000e+00> : vector<1xf32>
    %66 = vector.multi_reduction <add>, %65, %cst_18 [1, 2] : vector<1x16x1xf32> to vector<1xf32>
    %67 = vector.shape_cast %66 : vector<1xf32> to vector<1x1x1xf32>
    %68 = vector.extract %67[0, 0, 0] : f32 from vector<1x1x1xf32>
    %69 = tpu.iota {dimensions = array<i32: 0>} : vector<8x128xi32>
    %70 = tpu.iota {dimensions = array<i32: 1>} : vector<8x128xi32>
    %c0_i32 = arith.constant 0 : i32
    %71 = vector.broadcast %c0_i32 : i32 to vector<8x128xi32>
    %72 = arith.cmpi eq, %69, %71 : vector<8x128xi32>
    %c0_i32_19 = arith.constant 0 : i32
    %73 = vector.broadcast %c0_i32_19 : i32 to vector<8x128xi32>
    %74 = arith.cmpi eq, %70, %73 : vector<8x128xi32>
    %75 = arith.andi %72, %74 : vector<8x128xi1>
    %cst_20 = arith.constant 0.000000e+00 : f32
    %76 = vector.broadcast %68 : f32 to vector<8x128xf32>
    %77 = vector.broadcast %cst_20 : f32 to vector<8x128xf32>
    %78 = arith.select %75, %76, %77 : vector<8x128xi1>, vector<8x128xf32>
    %c0_21 = arith.constant 0 : index
    %c0_22 = arith.constant 0 : index
    %79 = vector.load %arg2[%c0_21, %c0_22] : memref<8x128xf32, #tpu.memory_space<vmem>>, vector<8x128xf32>
    tpu.vector_store %arg2[%c0_21, %c0_22], %78 {strides = array<i32>} : memref<8x128xf32, #tpu.memory_space<vmem>>, vector<8x128xf32>,
    return
  }
  func.func @transform_0(%arg0: i32) -> (i32, i32) {
    %c0_i32 = arith.constant 0 : i32
    %c0_i32_0 = arith.constant 0 : i32
    return %arg0, %c0_i32 : i32, i32
  }
  func.func @transform_1(%arg0: i32) -> (i32, i32) {
    %c0_i32 = arith.constant 0 : i32
    %c0_i32_0 = arith.constant 0 : i32
    return %arg0, %c0_i32 : i32, i32
  }
}

</mosaic_0001>

<llo_original>
// kernel: tpu_custom_call.1
$region0: #{tpu_custom_call.1}
  #allocation0 [shape = 'u32[]', space=smem, size = 0x4, offset = 0x4, fixed_abs, tag = 'smem constant byte address 0x4 - core index']
  #allocation1 [shape = 'u32[72,128]{1,0:T(1,128)}', space=vmem, size = 0x9000, scoped, tag = 'internal scratch']
  %s0 = inlined_call_operand.hbm [shape: f32[16,128], index: 0, kind: input, shape index: {}]
  %s1 = inlined_call_operand.hbm [shape: f32[8,128], index: 1, kind: output, shape index: {}]
  %s2 = sld [smem:[#allocation0]]
  $region18: #{tpu_custom_call.1} parent=0
    _
  %s4 = ssub.s32 1, %s2
  %s5 = scalar_select 0, %s4, %s2
  $region1: #{tpu_custom_call.1} parent=0
    #allocation2 [shape = 'u8[8192]{0}', space=vmem, size = 0x2000, scoped, tag = 'input window, operand 0, single buffered']
    #allocation3 [shape = 's32[1]{0}', space=sflag, size = 0x4, scoped, tag = 'scoped memory for tpu_custom_call.1']
    #allocation4 [shape = 's32[1]{0}', space=sflag, size = 0x4, scoped, tag = 'scoped memory for tpu_custom_call.1']
    #allocation5 [shape = 'u8[4096]{0}', space=vmem, size = 0x1000, scoped, tag = 'output window, operand 0, single buffered']
    %6 = vsyncpa [#allocation3], 0
    %7 = vsyncpa [#allocation4], 0
    // Predicated region
    $region2: #{tpu_custom_call.1} parent=1 // pred_check
      _
    $region3: #{tpu_custom_call.1} parent=1 // pred_check_branch
      %9 = sbr.rel (0) target = $region5
    $region4: #{tpu_custom_call.1} parent=1 // pred_region
      %11 = vsyncadd [#allocation3], 0
      %s12 = sshll.u32 %s0, 4
      %s13 = int_to_ptr.hbm [resolvable:$true] %s12
      %s14 = sshll.u32 [#allocation2], 4
      %s15 = int_to_ptr.vmem [resolvable:$true] %s14
      %20 = dma.hbm_to_vmem [thread:$0]  %s13, 256, %s15, [#allocation3], 128, 128, 8
    $region5: #{tpu_custom_call.1} parent=1 // pred_fallthru
      _
    // Predicated region
    $region6: #{tpu_custom_call.1} parent=1 // pred_check
      _
    $region7: #{tpu_custom_call.1} parent=1 // pred_check_branch
      %22 = sbr.rel (0) target = $region9
    $region8: #{tpu_custom_call.1} parent=1 // pred_region
      %24 = dma.done [#allocation3], 256
    $region9: #{tpu_custom_call.1} parent=1 // pred_fallthru
      _
    %v25 = vld [vmem:[#allocation2] sm:$0xff]
    %v26 = vld [vmem:[#allocation2 + $0x8] sm:$0xff]
    %v27 = vmul.f32 %v25, %v25
    %v28 = vmul.f32 %v26, %v26
    %v29 = vlaneseq
    %v30 = vshrl.u32 %v29, 7
    %v31 = vadd.s32 %v30, 8
    %s32 = smul.u32 0, 16
    %v33 = vstv %s32
    %v34 = vadd.s32 %v33, %v30
    %v35 = vadd.s32 %v33, %v31
    %vm36 = vcmp.lt.s32.totalorder %v34, 16
    %vm37 = vcmp.lt.s32.totalorder %v35, 16
    %vm38 = vcmask 130048
    %v39 = vsel %vm38, %v27, 0.0
    %40 = vadd.xlane.f32.xlu0 %v39
    %v41 = vpop.xlane.xlu0 %40
    %v42 = vsel %vm38, %v28, 0.0
    %43 = vadd.xlane.f32.xlu0 %v42
    %v44 = vpop.xlane.xlu0 %43
    %v45 = vsel %vm36, %v41, 0.0
    %v46 = vsel %vm37, %v44, 0.0
    %v47 = vrsqrt.pop %v45
    %v48 = vmul.f32 %v47, %v45
    %v49 = vmul.f32 %v48, %v47
    %v50 = vmul.f32 0.5, %v49
    %v51 = vsub.f32 1.5, %v50
    %v52 = vmul.f32 %v47, %v51
    %v53 = vmul.f32 %v45, %v52
    %vm54 = vcmp.eq.f32.partialorder %v45, inf
    %v55 = vsel %vm54, %v45, %v53
    %vm56 = vcmp.eq.f32.partialorder %v45, 0.0
    %v57 = vand.u32 %v45, 2147483648
    %v58 = vsel %vm56, %v57, %v55
    %v59 = vrsqrt.pop %v46
    %v60 = vmul.f32 %v59, %v46
    %v61 = vmul.f32 %v60, %v59
    %v62 = vmul.f32 0.5, %v61
    %v63 = vsub.f32 1.5, %v62
    %v64 = vmul.f32 %v59, %v63
    %v65 = vmul.f32 %v46, %v64
    %vm66 = vcmp.eq.f32.partialorder %v46, inf
    %v67 = vsel %vm66, %v46, %v65
    %vm68 = vcmp.eq.f32.partialorder %v46, 0.0
    %v69 = vand.u32 %v46, 2147483648
    %v70 = vsel %vm68, %v69, %v67
    %v71 = vadd.f32 %v58, 0.0
    %v72 = vadd.f32 %v70, 0.0
    %75 = vrot.lane.b32.xlu0 %v27, 112
    %v76 = vpop.permute.xlu0 %75
    %77 = vrot.lane.b32.xlu0 %v28, 112
    %v78 = vpop.permute.xlu0 %77
    %v81 = vsel %vm38, %v76, 0.0
    %82 = vadd.xlane.f32.xlu0 %v81
    %v83 = vpop.xlane.xlu0 %82
    %v84 = vsel %vm38, %v78, 0.0
    %85 = vadd.xlane.f32.xlu0 %v84
    %v86 = vpop.xlane.xlu0 %85
    %v87 = vsel %vm36, %v83, 0.0
    %v88 = vsel %vm37, %v86, 0.0
    %v89 = vrsqrt.pop %v87
    %v90 = vmul.f32 %v89, %v87
    %v91 = vmul.f32 %v90, %v89
    %v92 = vmul.f32 0.5, %v91
    %v93 = vsub.f32 1.5, %v92
    %v94 = vmul.f32 %v89, %v93
    %v95 = vmul.f32 %v87, %v94
    %vm96 = vcmp.eq.f32.partialorder %v87, inf
    %v97 = vsel %vm96, %v87, %v95
    %vm98 = vcmp.eq.f32.partialorder %v87, 0.0
    %v99 = vand.u32 %v87, 2147483648
    %v100 = vsel %vm98, %v99, %v97
    %v101 = vrsqrt.pop %v88
    %v102 = vmul.f32 %v101, %v88
    %v103 = vmul.f32 %v102, %v101
    %v104 = vmul.f32 0.5, %v103
    %v105 = vsub.f32 1.5, %v104
    %v106 = vmul.f32 %v101, %v105
    %v107 = vmul.f32 %v88, %v106
    %vm108 = vcmp.eq.f32.partialorder %v88, inf
    %v109 = vsel %vm108, %v88, %v107
    %vm110 = vcmp.eq.f32.partialorder %v88, 0.0
    %v111 = vand.u32 %v88, 2147483648
    %v112 = vsel %vm110, %v111, %v109
    %v113 = vadd.f32 %v71, %v100
    %v114 = vadd.f32 %v72, %v112
    %115 = vrot.lane.b32.xlu0 %v27, 96
    %v116 = vpop.permute.xlu0 %115
    %117 = vrot.lane.b32.xlu0 %v28, 96
    %v118 = vpop.permute.xlu0 %117
    %v121 = vsel %vm38, %v116, 0.0
    %122 = vadd.xlane.f32.xlu0 %v121
    %v123 = vpop.xlane.xlu0 %122
    %v124 = vsel %vm38, %v118, 0.0
    %125 = vadd.xlane.f32.xlu0 %v124
    %v126 = vpop.xlane.xlu0 %125
    %v127 = vsel %vm36, %v123, 0.0
    %v128 = vsel %vm37, %v126, 0.0
    %v129 = vrsqrt.pop %v127
    %v130 = vmul.f32 %v129, %v127
    %v131 = vmul.f32 %v130, %v129
    %v132 = vmul.f32 0.5, %v131
    %v133 = vsub.f32 1.5, %v132
    %v134 = vmul.f32 %v129, %v133
    %v135 = vmul.f32 %v127, %v134
    %vm136 = vcmp.eq.f32.partialorder %v127, inf
    %v137 = vsel %vm136, %v127, %v135
    %vm138 = vcmp.eq.f32.partialorder %v127, 0.0
    %v139 = vand.u32 %v127, 2147483648
    %v140 = vsel %vm138, %v139, %v137
    %v141 = vrsqrt.pop %v128
    %v142 = vmul.f32 %v141, %v128
    %v143 = vmul.f32 %v142, %v141
    %v144 = vmul.f32 0.5, %v143
    %v145 = vsub.f32 1.5, %v144
    %v146 = vmul.f32 %v141, %v145
    %v147 = vmul.f32 %v128, %v146
    %vm148 = vcmp.eq.f32.partialorder %v128, inf
    %v149 = vsel %vm148, %v128, %v147
    %vm150 = vcmp.eq.f32.partialorder %v128, 0.0
    %v151 = vand.u32 %v128, 2147483648
    %v152 = vsel %vm150, %v151, %v149
    %v153 = vadd.f32 %v113, %v140
    %v154 = vadd.f32 %v114, %v152
    %155 = vrot.lane.b32.xlu0 %v27, 80
    %v156 = vpop.permute.xlu0 %155
    %157 = vrot.lane.b32.xlu0 %v28, 80
    %v158 = vpop.permute.xlu0 %157
    %v161 = vsel %vm38, %v156, 0.0
    %162 = vadd.xlane.f32.xlu0 %v161
    %v163 = vpop.xlane.xlu0 %162
    %v164 = vsel %vm38, %v158, 0.0
    %165 = vadd.xlane.f32.xlu0 %v164
    %v166 = vpop.xlane.xlu0 %165
    %v167 = vsel %vm36, %v163, 0.0
    %v168 = vsel %vm37, %v166, 0.0
    %v169 = vrsqrt.pop %v167
    %v170 = vmul.f32 %v169, %v167
    %v171 = vmul.f32 %v170, %v169
    %v172 = vmul.f32 0.5, %v171
    %v173 = vsub.f32 1.5, %v172
    %v174 = vmul.f32 %v169, %v173
    %v175 = vmul.f32 %v167, %v174
    %vm176 = vcmp.eq.f32.partialorder %v167, inf
    %v177 = vsel %vm176, %v167, %v175
    %vm178 = vcmp.eq.f32.partialorder %v167, 0.0
    %v179 = vand.u32 %v167, 2147483648
    %v180 = vsel %vm178, %v179, %v177
    %v181 = vrsqrt.pop %v168
    %v182 = vmul.f32 %v181, %v168
    %v183 = vmul.f32 %v182, %v181
    %v184 = vmul.f32 0.5, %v183
    %v185 = vsub.f32 1.5, %v184
    %v186 = vmul.f32 %v181, %v185
    %v187 = vmul.f32 %v168, %v186
    %vm188 = vcmp.eq.f32.partialorder %v168, inf
    %v189 = vsel %vm188, %v168, %v187
    %vm190 = vcmp.eq.f32.partialorder %v168, 0.0
    %v191 = vand.u32 %v168, 2147483648
    %v192 = vsel %vm190, %v191, %v189
    %v193 = vadd.f32 %v153, %v180
    %v194 = vadd.f32 %v154, %v192
    %195 = vrot.lane.b32.xlu0 %v27, 64
    %v196 = vpop.permute.xlu0 %195
    %197 = vrot.lane.b32.xlu0 %v28, 64
    %v198 = vpop.permute.xlu0 %197
    %v201 = vsel %vm38, %v196, 0.0
    %202 = vadd.xlane.f32.xlu0 %v201
    %v203 = vpop.xlane.xlu0 %202
    %v204 = vsel %vm38, %v198, 0.0
    %205 = vadd.xlane.f32.xlu0 %v204
    %v206 = vpop.xlane.xlu0 %205
    %v207 = vsel %vm36, %v203, 0.0
    %v208 = vsel %vm37, %v206, 0.0
    %v209 = vrsqrt.pop %v207
    %v210 = vmul.f32 %v209, %v207
    %v211 = vmul.f32 %v210, %v209
    %v212 = vmul.f32 0.5, %v211
    %v213 = vsub.f32 1.5, %v212
    %v214 = vmul.f32 %v209, %v213
    %v215 = vmul.f32 %v207, %v214
    %vm216 = vcmp.eq.f32.partialorder %v207, inf
    %v217 = vsel %vm216, %v207, %v215
    %vm218 = vcmp.eq.f32.partialorder %v207, 0.0
    %v219 = vand.u32 %v207, 2147483648
    %v220 = vsel %vm218, %v219, %v217
    %v221 = vrsqrt.pop %v208
    %v222 = vmul.f32 %v221, %v208
    %v223 = vmul.f32 %v222, %v221
    %v224 = vmul.f32 0.5, %v223
    %v225 = vsub.f32 1.5, %v224
    %v226 = vmul.f32 %v221, %v225
    %v227 = vmul.f32 %v208, %v226
    %vm228 = vcmp.eq.f32.partialorder %v208, inf
    %v229 = vsel %vm228, %v208, %v227
    %vm230 = vcmp.eq.f32.partialorder %v208, 0.0
    %v231 = vand.u32 %v208, 2147483648
    %v232 = vsel %vm230, %v231, %v229
    %v233 = vadd.f32 %v193, %v220
    %v234 = vadd.f32 %v194, %v232
    %235 = vrot.lane.b32.xlu0 %v27, 48
    %v236 = vpop.permute.xlu0 %235
    %237 = vrot.lane.b32.xlu0 %v28, 48
    %v238 = vpop.permute.xlu0 %237
    %v241 = vsel %vm38, %v236, 0.0
    %242 = vadd.xlane.f32.xlu0 %v241
    %v243 = vpop.xlane.xlu0 %242
    %v244 = vsel %vm38, %v238, 0.0
    %245 = vadd.xlane.f32.xlu0 %v244
    %v246 = vpop.xlane.xlu0 %245
    %v247 = vsel %vm36, %v243, 0.0
    %v248 = vsel %vm37, %v246, 0.0
    %v249 = vrsqrt.pop %v247
    %v250 = vmul.f32 %v249, %v247
    %v251 = vmul.f32 %v250, %v249
    %v252 = vmul.f32 0.5, %v251
    %v253 = vsub.f32 1.5, %v252
    %v254 = vmul.f32 %v249, %v253
    %v255 = vmul.f32 %v247, %v254
    %vm256 = vcmp.eq.f32.partialorder %v247, inf
    %v257 = vsel %vm256, %v247, %v255
    %vm258 = vcmp.eq.f32.partialorder %v247, 0.0
    %v259 = vand.u32 %v247, 2147483648
    %v260 = vsel %vm258, %v259, %v257
    %v261 = vrsqrt.pop %v248
    %v262 = vmul.f32 %v261, %v248
    %v263 = vmul.f32 %v262, %v261
    %v264 = vmul.f32 0.5, %v263
    %v265 = vsub.f32 1.5, %v264
    %v266 = vmul.f32 %v261, %v265
    %v267 = vmul.f32 %v248, %v266
    %vm268 = vcmp.eq.f32.partialorder %v248, inf
    %v269 = vsel %vm268, %v248, %v267
    %vm270 = vcmp.eq.f32.partialorder %v248, 0.0
    %v271 = vand.u32 %v248, 2147483648
    %v272 = vsel %vm270, %v271, %v269
    %v273 = vadd.f32 %v233, %v260
    %v274 = vadd.f32 %v234, %v272
    %275 = vrot.lane.b32.xlu0 %v27, 32
    %v276 = vpop.permute.xlu0 %275
    %277 = vrot.lane.b32.xlu0 %v28, 32
    %v278 = vpop.permute.xlu0 %277
    %v281 = vsel %vm38, %v276, 0.0
    %282 = vadd.xlane.f32.xlu0 %v281
    %v283 = vpop.xlane.xlu0 %282
    %v284 = vsel %vm38, %v278, 0.0
    %285 = vadd.xlane.f32.xlu0 %v284
    %v286 = vpop.xlane.xlu0 %285
    %v287 = vsel %vm36, %v283, 0.0
    %v288 = vsel %vm37, %v286, 0.0
    %v289 = vrsqrt.pop %v287
    %v290 = vmul.f32 %v289, %v287
    %v291 = vmul.f32 %v290, %v289
    %v292 = vmul.f32 0.5, %v291
    %v293 = vsub.f32 1.5, %v292
    %v294 = vmul.f32 %v289, %v293
    %v295 = vmul.f32 %v287, %v294
    %vm296 = vcmp.eq.f32.partialorder %v287, inf
    %v297 = vsel %vm296, %v287, %v295
    %vm298 = vcmp.eq.f32.partialorder %v287, 0.0
    %v299 = vand.u32 %v287, 2147483648
    %v300 = vsel %vm298, %v299, %v297
    %v301 = vrsqrt.pop %v288
    %v302 = vmul.f32 %v301, %v288
    %v303 = vmul.f32 %v302, %v301
    %v304 = vmul.f32 0.5, %v303
    %v305 = vsub.f32 1.5, %v304
    %v306 = vmul.f32 %v301, %v305
    %v307 = vmul.f32 %v288, %v306
    %vm308 = vcmp.eq.f32.partialorder %v288, inf
    %v309 = vsel %vm308, %v288, %v307
    %vm310 = vcmp.eq.f32.partialorder %v288, 0.0
    %v311 = vand.u32 %v288, 2147483648
    %v312 = vsel %vm310, %v311, %v309
    %v313 = vadd.f32 %v273, %v300
    %v314 = vadd.f32 %v274, %v312
    %315 = vrot.lane.b32.xlu0 %v27, 16
    %v316 = vpop.permute.xlu0 %315
    %317 = vrot.lane.b32.xlu0 %v28, 16
    %v318 = vpop.permute.xlu0 %317
    %v321 = vsel %vm38, %v316, 0.0
    %322 = vadd.xlane.f32.xlu0 %v321
    %v323 = vpop.xlane.xlu0 %322
    %v324 = vsel %vm38, %v318, 0.0
    %325 = vadd.xlane.f32.xlu0 %v324
    %v326 = vpop.xlane.xlu0 %325
    %v327 = vsel %vm36, %v323, 0.0
    %v328 = vsel %vm37, %v326, 0.0
    %v329 = vrsqrt.pop %v327
    %v330 = vmul.f32 %v329, %v327
    %v331 = vmul.f32 %v330, %v329
    %v332 = vmul.f32 0.5, %v331
    %v333 = vsub.f32 1.5, %v332
    %v334 = vmul.f32 %v329, %v333
    %v335 = vmul.f32 %v327, %v334
    %vm336 = vcmp.eq.f32.partialorder %v327, inf
    %v337 = vsel %vm336, %v327, %v335
    %vm338 = vcmp.eq.f32.partialorder %v327, 0.0
    %v339 = vand.u32 %v327, 2147483648
    %v340 = vsel %vm338, %v339, %v337
    %v341 = vrsqrt.pop %v328
    %v342 = vmul.f32 %v341, %v328
    %v343 = vmul.f32 %v342, %v341
    %v344 = vmul.f32 0.5, %v343
    %v345 = vsub.f32 1.5, %v344
    %v346 = vmul.f32 %v341, %v345
    %v347 = vmul.f32 %v328, %v346
    %vm348 = vcmp.eq.f32.partialorder %v328, inf
    %v349 = vsel %vm348, %v328, %v347
    %vm350 = vcmp.eq.f32.partialorder %v328, 0.0
    %v351 = vand.u32 %v328, 2147483648
    %v352 = vsel %vm350, %v351, %v349
    %v353 = vadd.f32 %v313, %v340
    %v354 = vadd.f32 %v314, %v352
    %vm355 = vcmask 7168
    %v356 = vsel %vm355, %v353, 0.0
    %v357 = vsel %vm355, %v354, 0.0
    %v358 = vadd.f32 %v356, %v357
    %359 = vadd.xlane.f32.xlu0 %v358
    %v360 = vpop.xlane.xlu0 %359
    %v361 = vrot.slane %v360, 4
    %v362 = vadd.f32 %v360, %v361
    %v363 = vrot.slane %v362, 2
    %v364 = vadd.f32 %v362, %v363
    %v365 = vrot.slane %v364, 1
    %v366 = vadd.f32 %v364, %v365
    %s367 = vtos %v366
    %v368 = vlaneseq
    %v369 = vand.u32 %v368, 127
    %vm370 = vcmp.eq.s32.totalorder %v30, 0
    %vm371 = vcmp.eq.s32.totalorder %v369, 0
    %vm372 = vmand %vm370, %vm371
    %v373 = vstv %s367
    %v374 = vsel %vm372, %v373, 0.0
    %375 = vst [vmem:[#allocation5] sm:$0xff] %v374
    // Predicated region
    $region10: #{tpu_custom_call.1} parent=1 // pred_check
      _
    $region11: #{tpu_custom_call.1} parent=1 // pred_check_branch
      %377 = sbr.rel (0) target = $region13
    $region12: #{tpu_custom_call.1} parent=1 // pred_region
      %379 = vsyncadd [#allocation4], 0
      %s381 = sshll.u32 [#allocation5], 4
      %s382 = int_to_ptr.vmem [resolvable:$true] %s381
      %s383 = sshll.u32 %s1, 4
      %s384 = int_to_ptr.hbm [resolvable:$true] %s383
      %386 = dma.vmem_to_hbm [thread:$0]  %s382, 128, %s384, [#allocation4]
    $region13: #{tpu_custom_call.1} parent=1 // pred_fallthru
      _
    // Predicated region
    $region14: #{tpu_custom_call.1} parent=1 // pred_check
      _
    $region15: #{tpu_custom_call.1} parent=1 // pred_check_branch
      %388 = sbr.rel (0) target = $region17
    $region16: #{tpu_custom_call.1} parent=1 // pred_region
      %390 = dma.done [#allocation4], 128
    $region17: #{tpu_custom_call.1} parent=1 // pred_fallthru
      _
    %391 = vsyncpa [#allocation3], 1
    %392 = vsyncpa [#allocation4], 1

</llo_original>
